<compile_context>
chip_gen: v5e
topology: v5e:2x2
jax: 0.10.0
libtpu: 0.0.40
codegen_flags: <defaults>
</compile_context>

<pallas_src>
import functools

import jax
import jax.numpy as jnp
from jax.experimental import pallas as pl
from jax.experimental.pallas import tpu as pltpu


def _encoder_kernel(r_ref, w1_ref, b1_ref, wcat_ref, bcat_ref,
                    out_ref, acc_ref, *, n_total, z_dim):
    """Grid = (batch tiles [parallel], packed-point tiles [arbitrary/reduce])."""
    k = pl.program_id(1)

    # --- init accumulator at the start of each batch tile's reduction ---
    @pl.when(k == 0)
    def _():
        acc_ref[...] = jnp.zeros_like(acc_ref)

    # --- accumulate sum over the (packed) points axis for this block ---
    # Upcast the (possibly bf16) streamed block to f32 before summing so the
    # accumulation stays f32 on every generation (v5e VPU has no bf16 ALU).
    # NOTE(v7x): if profiling shows VALU/XLU (not DMA) binding after the bf16 +
    # lane-packing changes, switch to leading-axis accumulation here.
    acc_ref[...] += jnp.sum(r_ref[...].astype(jnp.float32), axis=1)  # (tb, Rg)

    # --- finalize: mean, MLP heads, single store (runs once per batch tile) ---
    @pl.when(k == pl.num_programs(1) - 1)
    def _():
        # acc holds g lane-packed partial sums per feature; w1_ref is W1 tiled
        # vertically g times (Rg, R), so the matmul folds the g groups back
        # together:  sum_j acc[:, j*R:(j+1)*R] @ W1  ==  acc @ tile(W1, (g,1)).
        r_mean = acc_ref[...] * (1.0 / n_total)            # divide by TRUE N
        h = jnp.dot(r_mean, w1_ref[...],
                    preferred_element_type=jnp.float32) + b1_ref[...]
        hidden = jnp.maximum(h, 0.0)                       # (tb, R)

        # Fused mu|sigma head: one MXU dot over (R, 2Z).
        y = jnp.dot(hidden, wcat_ref[...],
                    preferred_element_type=jnp.float32) + bcat_ref[...]

        if z_dim % 128 == 0:
            # lane-aligned split: sigmoid only on the sigma half
            out_ref[:, :z_dim] = y[:, :z_dim].astype(out_ref.dtype)
            out_ref[:, z_dim:] = (0.1 + 0.9 * jax.nn.sigmoid(y[:, z_dim:])
                                  ).astype(out_ref.dtype)
        else:
            # small / unaligned Z: column mask avoids sub-lane slicing
            sig = 0.1 + 0.9 * jax.nn.sigmoid(y)            # EUP, cheap
            cols = jax.lax.broadcasted_iota(jnp.int32, y.shape, 1)
            out_ref[...] = jnp.where(cols < z_dim, y, sig).astype(out_ref.dtype)


def _round_up(x, m):
    return ((x + m - 1) // m) * m


def _vmem_budget():
    """Per-buffer streamed-block byte target + vmem limit, from the chip's VMEM."""
    try:
        cap = int(pltpu.get_tpu_info().vmem_capacity_bytes)
    except Exception:  # pragma: no cover - conservative fallback
        cap = 64 * 1024 * 1024
    # v7x (64 MiB): 16 MiB blocks / 48 MiB limit. v5e/v6e (128 MiB): 24 / 64.
    target_block = min(24 * 1024 * 1024, max(4 * 1024 * 1024, cap // 4))
    vmem_limit = min(64 * 1024 * 1024, max(32 * 1024 * 1024, (cap * 3) // 4))
    return target_block, vmem_limit


def _pick_batch_tile(B):
    if B <= 8:
        return B                            # can't split below one sublane tile
    # >= 2 grid steps on the parallel axis so both v7x TensorCores get work.
    return min(256, max(8, (((B + 1) // 2) // 8) * 8))


def _pick_points_tile(Ng, tb, Rg, itemsize, target_block_bytes):
    max_tn = max(8, target_block_bytes // max(1, tb * Rg * itemsize))
    if Ng <= max_tn:
        return Ng                           # full dim -> always a legal block
    return max(8, (max_tn // 8) * 8)


def distribution_encoder(r, w1, b1, wmu, bmu, wsig, bsig, *,
                         tb=None, tn=None, stream_dtype=jnp.bfloat16):
    """r: (B, N, R). Returns (mu, sigma), each (B, Z) float32."""
    B, N, R = r.shape
    Z = wmu.shape[1]

    # Lane-packing factor: pack g consecutive points into the lane dim so the
    # streamed minor dim is 128-lane dense when R < 128.
    g = (128 // R) if (R < 128 and 128 % R == 0) else 1
    Rg = g * R

    target_block, vmem_limit = _vmem_budget()

    tb = _pick_batch_tile(B) if tb is None else tb
    B_pad = _round_up(B, tb)
    assert tb % 8 == 0 or tb == B_pad, "tb must be a multiple of 8 or the full (padded) batch"

    itemsize = jnp.dtype(stream_dtype).itemsize
    Ng0 = pl.cdiv(N, g)
    tn = _pick_points_tile(Ng0, tb, Rg, itemsize, target_block) if tn is None else tn
    Ng = _round_up(Ng0, tn)
    N_pad = Ng * g
    assert tn % 8 == 0 or tn == Ng, "tn must be a multiple of 8 or the full packed-points dim"

    # Zero-pad B and N: zero point-rows add 0 to the sum and the mean divides
    # by the true N, so padding is exact; padded batch rows are sliced off.
    r_s = r.astype(stream_dtype)
    if (B_pad != B) or (N_pad != N):
        r_s = jnp.pad(r_s, ((0, B_pad - B), (0, N_pad - N), (0, 0)))
    r_s = r_s.reshape(B_pad, Ng, Rg)

    # Fold the lane packing into the first layer: tile W1 vertically g times.
    w1_rep = jnp.tile(w1, (g, 1))                       # (Rg, R)
    # Fused mu|sigma head parameters.
    wcat = jnp.concatenate([wmu, wsig], axis=1)         # (R, 2Z)
    bcat = jnp.concatenate([bmu, bsig], axis=1)         # (1, 2Z)

    grid = (B_pad // tb, Ng // tn)
    kernel = functools.partial(_encoder_kernel, n_total=N, z_dim=Z)

    out = pl.pallas_call(
        kernel,
        out_shape=jax.ShapeDtypeStruct((B_pad, 2 * Z), jnp.float32),
        grid_spec=pltpu.PrefetchScalarGridSpec(
            num_scalar_prefetch=0,
            grid=grid,
            in_specs=[
                # streamed r tiles, double-buffered by the pipeline
                pl.BlockSpec((tb, tn, Rg), lambda i, k: (i, k, 0)),
                # tiny weights/biases: resident across the whole grid
                pl.BlockSpec((Rg, R), lambda i, k: (0, 0)),
                pl.BlockSpec((1, R), lambda i, k: (0, 0)),
                pl.BlockSpec((R, 2 * Z), lambda i, k: (0, 0)),
                pl.BlockSpec((1, 2 * Z), lambda i, k: (0, 0)),
            ],
            out_specs=pl.BlockSpec((tb, 2 * Z), lambda i, k: (i, 0)),
            scratch_shapes=[pltpu.VMEM((tb, Rg), jnp.float32)],
        ),
        compiler_params=pltpu.CompilerParams(
            # batch axis -> both v7x TensorCores; packed-N axis is the reduction
            dimension_semantics=("parallel", "arbitrary"),
            vmem_limit_bytes=vmem_limit,
        ),
    )(r_s, w1_rep, b1, wcat, bcat)

    mu = out[:B, :Z]
    sigma = out[:B, Z:]
    return mu, sigma


def init_params(key, r_dim, z_dim):
    """Deterministic synthetic parameters (shapes match nn.Linear fields)."""
    k1, k2, k3, k4, k5, k6 = jax.random.split(key, 6)
    scale1 = 1.0 / jnp.sqrt(r_dim)
    # stored as (in, out): transpose of torch's (out, in)
    w1 = jax.random.uniform(k1, (r_dim, r_dim), jnp.float32, -scale1, scale1)
    b1 = jax.random.uniform(k2, (1, r_dim), jnp.float32, -scale1, scale1)
    wmu = jax.random.uniform(k3, (r_dim, z_dim), jnp.float32, -scale1, scale1)
    bmu = jax.random.uniform(k4, (1, z_dim), jnp.float32, -scale1, scale1)
    wsig = jax.random.uniform(k5, (r_dim, z_dim), jnp.float32, -scale1, scale1)
    bsig = jax.random.uniform(k6, (1, z_dim), jnp.float32, -scale1, scale1)
    return w1, b1, wmu, bmu, wsig, bsig


def _reference(r, w1, b1, wmu, bmu, wsig, bsig):
    r_mean = jnp.mean(r, axis=1)
    hidden = jax.nn.relu(r_mean @ w1 + b1)
    mu = hidden @ wmu + bmu
    sigma = 0.1 + 0.9 * jax.nn.sigmoid(hidden @ wsig + bsig)
    return mu, sigma


if __name__ == "__main__":
    # TODO(synk): torch.distributions.Normal is just a (mu, sigma) wrapper; the
    # kernel returns the two tensors instead of a distribution object.
    jax.config.update("jax_default_matmul_precision", "highest")

    B, N, R, Z = 2, 8, 32, 16   # batch, num_points (seq), r_dim, z_dim
    key = jax.random.PRNGKey(0)
    kr, kp, kr2, kr3 = jax.random.split(key, 4)
    r = jax.random.normal(kr, (B, N, R), dtype=jnp.float32)
    params = init_params(kp, R, Z)
    mu_ref, sigma_ref = _reference(r, *params)

    # 1) exact-precision path (f32 stream), small shape, single grid step.
    mu, sigma = distribution_encoder(r, *params, stream_dtype=jnp.float32)
    jax.block_until_ready((mu, sigma))
    assert jnp.allclose(mu, mu_ref, atol=1e-5), "mu mismatch (f32 stream)"
    assert jnp.allclose(sigma, sigma_ref, atol=1e-5), "sigma mismatch (f32 stream)"
    assert bool(jnp.all(sigma > 0.1)) and bool(jnp.all(sigma < 1.0))

    # 2) default bf16-streamed path (bandwidth-optimized) on the same shape.
    mu_b, sigma_b = distribution_encoder(r, *params)
    jax.block_until_ready((mu_b, sigma_b))
    mu_bref, sigma_bref = _reference(r.astype(jnp.bfloat16).astype(jnp.float32), *params)
    assert jnp.allclose(mu_b, mu_bref, atol=1e-4), "mu mismatch (bf16 stream)"
    assert jnp.allclose(sigma_b, sigma_bref, atol=1e-4), "sigma mismatch (bf16 stream)"
    assert jnp.allclose(mu_b, mu_ref, atol=5e-2), "bf16 stream drifted from f32 ref"

    # 3) tiled + padded path: batch grid (2 steps), 2-step packed-N reduction,
    #    N not a multiple of the packed tile (exercises zero-padding).
    B2, N2 = 16, 50
    r2 = jax.random.normal(kr2, (B2, N2, R), dtype=jnp.float32)
    mu2, sigma2 = distribution_encoder(r2, *params, tb=8, tn=8)
    jax.block_until_ready((mu2, sigma2))
    mu2_bref, sigma2_bref = _reference(
        r2.astype(jnp.bfloat16).astype(jnp.float32), *params)
    assert jnp.allclose(mu2, mu2_bref, atol=2e-4), "tiled mu mismatch"
    assert jnp.allclose(sigma2, sigma2_bref, atol=1e-4), "tiled sigma mismatch"

    # 4) unpacked path (R = 128 -> g = 1), auto tiling, f32 stream.
    R3 = 128
    params3 = init_params(kp, R3, Z)
    r3 = jax.random.normal(kr3, (4, 24, R3), dtype=jnp.float32)
    mu3, sigma3 = distribution_encoder(r3, *params3, stream_dtype=jnp.float32)
    jax.block_until_ready((mu3, sigma3))
    mu3_ref, sigma3_ref = _reference(r3, *params3)
    assert jnp.allclose(mu3, mu3_ref, atol=1e-5), "R=128 mu mismatch"
    assert jnp.allclose(sigma3, sigma3_ref, atol=1e-5), "R=128 sigma mismatch"

    print("KERNEL_OK")
</pallas_src>

<mosaic_0001>
module attributes {stable_mosaic.version = 11 : i64} {
  func.func @_encoder_kernel(%arg0: i32, %arg1: i32, %arg2: memref<2x2x128xf32, #tpu.memory_space<vmem>>, %arg3: memref<128x32xf32, #tpu.memory_space<vmem>>, %arg4: memref<1x32xf32, #tpu.memory_space<vmem>>, %arg5: memref<32x32xf32, #tpu.memory_space<vmem>>, %arg6: memref<1x32xf32, #tpu.memory_space<vmem>>, %arg7: memref<2x32xf32, #tpu.memory_space<vmem>>, %arg8: memref<2x128xf32, #tpu.memory_space<vmem>>) attributes {dimension_semantics = [#tpu.dimension_semantics<parallel>, #tpu.dimension_semantics<arbitrary>], iteration_bounds = array<i64: 1, 1>, scalar_prefetch = 0 : i64, scratch_operands = 1 : i64, tpu.core_type = #tpu.core_type<tc>, window_params = [{transform_indices = @transform_0, window_bounds = array<i64: 2, 2, 128>}, {pipeline_mode = #tpu.pipeline_mode<synchronous>, transform_indices = @transform_1, window_bounds = array<i64: 128, 32>}, {pipeline_mode = #tpu.pipeline_mode<synchronous>, transform_indices = @transform_2, window_bounds = array<i64: 1, 32>}, {pipeline_mode = #tpu.pipeline_mode<synchronous>, transform_indices = @transform_3, window_bounds = array<i64: 32, 32>}, {pipeline_mode = #tpu.pipeline_mode<synchronous>, transform_indices = @transform_4, window_bounds = array<i64: 1, 32>}, {transform_indices = @transform_5, window_bounds = array<i64: 2, 32>}]} {
    %c0_i32 = arith.constant 0 : i32
    %0 = arith.cmpi eq, %arg1, %c0_i32 : i32
    %1 = arith.extui %0 : i1 to i32
    %c0_i32_0 = arith.constant 0 : i32
    %2 = arith.cmpi ne, %1, %c0_i32_0 : i32
    scf.if %2 {
      %cst_9 = arith.constant 0.000000e+00 : f32
      %11 = vector.broadcast %cst_9 : f32 to vector<2x128xf32>
      %c0_10 = arith.constant 0 : index
      %c0_11 = arith.constant 0 : index
      %12 = vector.load %arg8[%c0_10, %c0_11] : memref<2x128xf32, #tpu.memory_space<vmem>>, vector<2x128xf32>
      tpu.vector_store %arg8[%c0_10, %c0_11], %11 {strides = array<i32>} : memref<2x128xf32, #tpu.memory_space<vmem>>, vector<2x128xf32>,
    } else {
    }
    %c0 = arith.constant 0 : index
    %c0_1 = arith.constant 0 : index
    %3 = vector.load %arg8[%c0, %c0_1] : memref<2x128xf32, #tpu.memory_space<vmem>>, vector<2x128xf32>
    %c0_2 = arith.constant 0 : index
    %c0_3 = arith.constant 0 : index
    %c0_4 = arith.constant 0 : index
    %4 = vector.load %arg2[%c0_2, %c0_3, %c0_4] : memref<2x2x128xf32, #tpu.memory_space<vmem>>, vector<2x2x128xf32>
    %cst = arith.constant dense<0.000000e+00> : vector<2x128xf32>
    %5 = vector.multi_reduction <add>, %4, %cst [1] : vector<2x2x128xf32> to vector<2x128xf32>
    %6 = arith.addf %3, %5 : vector<2x128xf32>
    %c0_5 = arith.constant 0 : index
    %c0_6 = arith.constant 0 : index
    %7 = vector.load %arg8[%c0_5, %c0_6] : memref<2x128xf32, #tpu.memory_space<vmem>>, vector<2x128xf32>
    tpu.vector_store %arg8[%c0_5, %c0_6], %6 {strides = array<i32>} : memref<2x128xf32, #tpu.memory_space<vmem>>, vector<2x128xf32>,
    %c0_i32_7 = arith.constant 0 : i32
    %8 = arith.cmpi eq, %arg1, %c0_i32_7 : i32
    %9 = arith.extui %8 : i1 to i32
    %c0_i32_8 = arith.constant 0 : i32
    %10 = arith.cmpi ne, %9, %c0_i32_8 : i32
    scf.if %10 {
      %c0_9 = arith.constant 0 : index
      %c0_10 = arith.constant 0 : index
      %11 = vector.load %arg8[%c0_9, %c0_10] : memref<2x128xf32, #tpu.memory_space<vmem>>, vector<2x128xf32>
      %cst_11 = arith.constant 1.250000e-01 : f32
      %12 = vector.broadcast %cst_11 : f32 to vector<2x128xf32>
      %13 = arith.mulf %11, %12 : vector<2x128xf32>
      %c0_12 = arith.constant 0 : index
      %c0_13 = arith.constant 0 : index
      %14 = vector.load %arg3[%c0_12, %c0_13] : memref<128x32xf32, #tpu.memory_space<vmem>>, vector<128x32xf32>
      %cst_14 = arith.constant dense<0.000000e+00> : vector<2x32xf32>
      %15 = tpu.matmul %13, %14, %cst_14 {dimension_numbers = #tpu.dot_dimension_numbers<[1], [0], [0], [1], [0, 0, 1, 1], [], []>, precision = #tpu.contract_precision<fp32>} : vector<2x128xf32>, vector<128x32xf32>, vector<2x32xf32> -> vector<2x32xf32>
      %c0_15 = arith.constant 0 : index
      %c0_16 = arith.constant 0 : index
      %16 = vector.load %arg4[%c0_15, %c0_16] : memref<1x32xf32, #tpu.memory_space<vmem>>, vector<1x32xf32>
      %17 = vector.broadcast %16 : vector<1x32xf32> to vector<2x32xf32>
      %18 = arith.addf %15, %17 : vector<2x32xf32>
      %cst_17 = arith.constant 0.000000e+00 : f32
      %19 = vector.broadcast %cst_17 : f32 to vector<2x32xf32>
      %20 = arith.maximumf %18, %19 : vector<2x32xf32>
      %c0_18 = arith.constant 0 : index
      %c0_19 = arith.constant 0 : index
      %21 = vector.load %arg5[%c0_18, %c0_19] : memref<32x32xf32, #tpu.memory_space<vmem>>, vector<32x32xf32>
      %cst_20 = arith.constant dense<0.000000e+00> : vector<2x32xf32>
      %22 = tpu.matmul %20, %21, %cst_20 {dimension_numbers = #tpu.dot_dimension_numbers<[1], [0], [0], [1], [0, 0, 1, 1], [], []>, precision = #tpu.contract_precision<fp32>} : vector<2x32xf32>, vector<32x32xf32>, vector<2x32xf32> -> vector<2x32xf32>
      %c0_21 = arith.constant 0 : index
      %c0_22 = arith.constant 0 : index
      %23 = vector.load %arg6[%c0_21, %c0_22] : memref<1x32xf32, #tpu.memory_space<vmem>>, vector<1x32xf32>
      %24 = vector.broadcast %23 : vector<1x32xf32> to vector<2x32xf32>
      %25 = arith.addf %22, %24 : vector<2x32xf32>
      %26 = arith.negf %25 : vector<2x32xf32>
      %27 = math.exp %26 : vector<2x32xf32>
      %cst_23 = arith.constant 1.000000e+00 : f32
      %28 = vector.broadcast %cst_23 : f32 to vector<2x32xf32>
      %29 = arith.addf %28, %27 : vector<2x32xf32>
      %30 = arith.divf %28, %29 : vector<2x32xf32>
      %cst_24 = arith.constant 0.899999976 : f32
      %31 = vector.broadcast %cst_24 : f32 to vector<2x32xf32>
      %32 = arith.mulf %31, %30 : vector<2x32xf32>
      %cst_25 = arith.constant 1.000000e-01 : f32
      %33 = vector.broadcast %cst_25 : f32 to vector<2x32xf32>
      %34 = arith.addf %33, %32 : vector<2x32xf32>
      %35 = tpu.iota {dimensions = array<i32: 1>} : vector<2x32xi32>
      %c16_i32 = arith.constant 16 : i32
      %36 = vector.broadcast %c16_i32 : i32 to vector<2x32xi32>
      %37 = arith.cmpi slt, %35, %36 : vector<2x32xi32>
      %38 = arith.select %37, %25, %34 : vector<2x32xi1>, vector<2x32xf32>
      %c0_26 = arith.constant 0 : index
      %c0_27 = arith.constant 0 : index
      %39 = vector.load %arg7[%c0_26, %c0_27] : memref<2x32xf32, #tpu.memory_space<vmem>>, vector<2x32xf32>
      tpu.vector_store %arg7[%c0_26, %c0_27], %38 {strides = array<i32>} : memref<2x32xf32, #tpu.memory_space<vmem>>, vector<2x32xf32>,
    } else {
    }
    return
  }
  func.func @transform_0(%arg0: i32, %arg1: i32) -> (i32, i32, i32) {
    %c0_i32 = arith.constant 0 : i32
    %c0_i32_0 = arith.constant 0 : i32
    return %arg0, %arg1, %c0_i32 : i32, i32, i32
  }
  func.func @transform_1(%arg0: i32, %arg1: i32) -> (i32, i32) {
    %c0_i32 = arith.constant 0 : i32
    %c0_i32_0 = arith.constant 0 : i32
    %c0_i32_1 = arith.constant 0 : i32
    return %c0_i32, %c0_i32_0 : i32, i32
  }
  func.func @transform_2(%arg0: i32, %arg1: i32) -> (i32, i32) {
    %c0_i32 = arith.constant 0 : i32
    %c0_i32_0 = arith.constant 0 : i32
    %c0_i32_1 = arith.constant 0 : i32
    return %c0_i32, %c0_i32_0 : i32, i32
  }
  func.func @transform_3(%arg0: i32, %arg1: i32) -> (i32, i32) {
    %c0_i32 = arith.constant 0 : i32
    %c0_i32_0 = arith.constant 0 : i32
    %c0_i32_1 = arith.constant 0 : i32
    return %c0_i32, %c0_i32_0 : i32, i32
  }
  func.func @transform_4(%arg0: i32, %arg1: i32) -> (i32, i32) {
    %c0_i32 = arith.constant 0 : i32
    %c0_i32_0 = arith.constant 0 : i32
    %c0_i32_1 = arith.constant 0 : i32
    return %c0_i32, %c0_i32_0 : i32, i32
  }
  func.func @transform_5(%arg0: i32, %arg1: i32) -> (i32, i32) {
    %c0_i32 = arith.constant 0 : i32
    %c0_i32_0 = arith.constant 0 : i32
    return %arg0, %c0_i32 : i32, i32
  }
}

</mosaic_0001>

<llo_original>
// kernel: tpu_custom_call.1
$region0: #{tpu_custom_call.1}
  #allocation0 [shape = 'u32[]', space=smem, size = 0x4, offset = 0x4, fixed_abs, tag = 'smem constant byte address 0x4 - core index']
  #allocation1 [shape = 'u32[72,128]{1,0:T(1,128)}', space=vmem, size = 0x9000, scoped, tag = 'internal scratch']
  #allocation2 [shape = 'f32[2,128]{1,0:T(2,128)}', space=vmem, size = 0x400, scoped, tag = 'scratch operand']
  %s0 = inlined_call_operand.vmem [shape: f32[2,2,128], index: 0, kind: input, shape index: {}]
  %s1 = inlined_call_operand.vmem [shape: f32[128,32], index: 1, kind: input, shape index: {}]
  %s2 = inlined_call_operand.vmem [shape: f32[1,32], index: 2, kind: input, shape index: {}]
  %s3 = inlined_call_operand.vmem [shape: f32[32,32], index: 3, kind: input, shape index: {}]
  %s4 = inlined_call_operand.vmem [shape: f32[1,32], index: 4, kind: input, shape index: {}]
  %s5 = inlined_call_operand.hbm [shape: f32[2,32], index: 5, kind: output, shape index: {}]
  %s6 = sld [smem:[#allocation0]]
  $region38: #{tpu_custom_call.1} parent=0
    _
  %s8 = ssub.s32 1, %s6
  %s9 = scalar_select 0, %s8, %s6
  $region1: #{tpu_custom_call.1} parent=0
    #allocation3 [shape = 'u8[1024]{0}', space=vmem, size = 0x400, scoped, tag = 'output window, operand 0, single buffered']
    #allocation4 [shape = 's32[1]{0}', space=sflag, size = 0x4, scoped, tag = 'scoped memory for tpu_custom_call.1']
    %10 = vsyncpa [#allocation4], 0
    // Predicated region
    $region2: #{tpu_custom_call.1} parent=1 // pred_check
      _
    $region3: #{tpu_custom_call.1} parent=1 // pred_check_branch
      %12 = sbr.rel (0) target = $region5
    $region4: #{tpu_custom_call.1} parent=1 // pred_region
      _
    $region5: #{tpu_custom_call.1} parent=1 // pred_fallthru
      _
    // Predicated region
    $region6: #{tpu_custom_call.1} parent=1 // pred_check
      _
    $region7: #{tpu_custom_call.1} parent=1 // pred_check_branch
      %14 = sbr.rel (0) target = $region9
    $region8: #{tpu_custom_call.1} parent=1 // pred_region
      _
    $region9: #{tpu_custom_call.1} parent=1 // pred_fallthru
      _
    // Predicated region
    $region10: #{tpu_custom_call.1} parent=1 // pred_check
      _
    $region11: #{tpu_custom_call.1} parent=1 // pred_check_branch
      %16 = sbr.rel (0) target = $region13
    $region12: #{tpu_custom_call.1} parent=1 // pred_region
      _
    $region13: #{tpu_custom_call.1} parent=1 // pred_fallthru
      _
    // Predicated region
    $region14: #{tpu_custom_call.1} parent=1 // pred_check
      _
    $region15: #{tpu_custom_call.1} parent=1 // pred_check_branch
      %18 = sbr.rel (0) target = $region17
    $region16: #{tpu_custom_call.1} parent=1 // pred_region
      _
    $region17: #{tpu_custom_call.1} parent=1 // pred_fallthru
      _
    // Predicated region
    $region18: #{tpu_custom_call.1} parent=1 // pred_check
      _
    $region19: #{tpu_custom_call.1} parent=1 // pred_check_branch
      %20 = sbr.rel (0) target = $region21
    $region20: #{tpu_custom_call.1} parent=1 // pred_region
      _
    $region21: #{tpu_custom_call.1} parent=1 // pred_fallthru
      _
    %p21 = scmp.eq.s32.totalorder 0, 0
    // Predicated region
    $region22: #{tpu_custom_call.1} parent=1 // pred_check
      %p22 = pneg %p21
    $region23: #{tpu_custom_call.1} parent=1 // pred_check_branch
      %24 = sbr.rel (%p22) target = $region25
    $region24: #{tpu_custom_call.1} parent=1 // pred_region
      %25 = vst [vmem:[#allocation2] sm:$0x3] 0.0
    $region25: #{tpu_custom_call.1} parent=1 // pred_fallthru
      _
    %v26 = vld [vmem:[#allocation2] sm:$0x3]
    %v27 = vld [vmem:[%s0] sm:$0x3]
    %v28 = vld [vmem:[%s0 + $0x2] sm:$0x3]
    %vm29 = vcmask 1041408
    %v30 = vsel %vm29, %v27, 0.0
    %v31 = vrot.slane %v30, 4
    %v32 = vadd.f32 %v30, %v31
    %v33 = vrot.slane %v32, 2
    %v34 = vadd.f32 %v32, %v33
    %v35 = vrot.slane %v34, 1
    %v36 = vadd.f32 %v34, %v35
    %v37 = vsel %vm29, %v28, 0.0
    %v38 = vrot.slane %v37, 4
    %v39 = vadd.f32 %v37, %v38
    %v40 = vrot.slane %v39, 2
    %v41 = vadd.f32 %v39, %v40
    %v42 = vrot.slane %v41, 1
    %v43 = vadd.f32 %v41, %v42
    %vm46 = vcmask 1041409
    %v47 = vsel %vm46, %v43, %v36
    %v49 = vadd.f32 %v26, %v47
    %50 = vst [vmem:[#allocation2] sm:$0x3] %v49
    // Predicated region
    $region26: #{tpu_custom_call.1} parent=1 // pred_check
      %p51 = pneg %p21
    $region27: #{tpu_custom_call.1} parent=1 // pred_check_branch
      %53 = sbr.rel (%p51) target = $region29
    $region28: #{tpu_custom_call.1} parent=1 // pred_region
      %v54 = vld [vmem:[#allocation2] sm:$0x3]
      %v55 = vmul.f32 %v54, 0.125
      %v56 = vld [vmem:[%s1] sm:$0xff]
      %v57 = vld [vmem:[%s1 + $0x8] sm:$0xff]
      %v58 = vld [vmem:[%s1 + $0x10] sm:$0xff]
      %v59 = vld [vmem:[%s1 + $0x18] sm:$0xff]
      %v60 = vld [vmem:[%s1 + $0x20] sm:$0xff]
      %v61 = vld [vmem:[%s1 + $0x28] sm:$0xff]
      %v62 = vld [vmem:[%s1 + $0x30] sm:$0xff]
      %v63 = vld [vmem:[%s1 + $0x38] sm:$0xff]
      %v64 = vld [vmem:[%s1 + $0x40] sm:$0xff]
      %v65 = vld [vmem:[%s1 + $0x48] sm:$0xff]
      %v66 = vld [vmem:[%s1 + $0x50] sm:$0xff]
      %v67 = vld [vmem:[%s1 + $0x58] sm:$0xff]
      %v68 = vld [vmem:[%s1 + $0x60] sm:$0xff]
      %v69 = vld [vmem:[%s1 + $0x68] sm:$0xff]
      %v70 = vld [vmem:[%s1 + $0x70] sm:$0xff]
      %v71 = vld [vmem:[%s1 + $0x78] sm:$0xff]
      %v72 = vld [vmem:[%s2] sm:$0x1]
      %v74 = vperm.slane %v72, 0
      %v76 = vand.u32 %v71, 4294901760
      %77 = vmatpush.msra.mxu0 %v76
      %v78 = vand.u32 %v70, 4294901760
      %79 = vmatpush.msra.mxu0 %v78
      %v80 = vand.u32 %v69, 4294901760
      %81 = vmatpush.msra.mxu0 %v80
      %v82 = vand.u32 %v68, 4294901760
      %83 = vmatpush.msra.mxu0 %v82
      %v84 = vand.u32 %v67, 4294901760
      %85 = vmatpush.msra.mxu0 %v84
      %v86 = vand.u32 %v66, 4294901760
      %87 = vmatpush.msra.mxu0 %v86
      %v88 = vand.u32 %v65, 4294901760
      %89 = vmatpush.msra.mxu0 %v88
      %v90 = vand.u32 %v64, 4294901760
      %91 = vmatpush.msra.mxu0 %v90
      %v92 = vand.u32 %v63, 4294901760
      %93 = vmatpush.msra.mxu0 %v92
      %v94 = vand.u32 %v62, 4294901760
      %95 = vmatpush.msra.mxu0 %v94
      %v96 = vand.u32 %v61, 4294901760
      %97 = vmatpush.msra.mxu0 %v96
      %v98 = vand.u32 %v60, 4294901760
      %99 = vmatpush.msra.mxu0 %v98
      %v100 = vand.u32 %v59, 4294901760
      %101 = vmatpush.msra.mxu0 %v100
      %v102 = vand.u32 %v58, 4294901760
      %103 = vmatpush.msra.mxu0 %v102
      %v104 = vand.u32 %v57, 4294901760
      %105 = vmatpush.msra.mxu0 %v104
      %v106 = vand.u32 %v56, 4294901760
      %107 = vmatpush.msra.mxu0 %v106
      %v108 = vand.u32 %v55, 4294901760
      %v109 = vsub.f32 %v55, %v108
      %v110 = vand.u32 %v109, 4294901760
      %v111 = vsub.f32 %v109, %v110
      %v112 = vand.u32 %v111, 4294901760
      %113 = vmatmul.f32.gmra.mxu0 %v112
      %v114 = vpop.f32.mrf.mxu0
      %v115 = vadd.f32 %v74, %v114
      %116 = vdwg.mxu0
      %v117 = vand.u32 %v71, 4294901760
      %v118 = vsub.f32 %v71, %v117
      %v119 = vand.u32 %v118, 4294901760
      %v120 = vsub.f32 %v118, %v119
      %v121 = vand.u32 %v120, 4294901760
      %122 = vmatpush.msra.mxu0 %v121
      %v123 = vand.u32 %v70, 4294901760
      %v124 = vsub.f32 %v70, %v123
      %v125 = vand.u32 %v124, 4294901760
      %v126 = vsub.f32 %v124, %v125
      %v127 = vand.u32 %v126, 4294901760
      %128 = vmatpush.msra.mxu0 %v127
      %v129 = vand.u32 %v69, 4294901760
      %v130 = vsub.f32 %v69, %v129
      %v131 = vand.u32 %v130, 4294901760
      %v132 = vsub.f32 %v130, %v131
      %v133 = vand.u32 %v132, 4294901760
      %134 = vmatpush.msra.mxu0 %v133
      %v135 = vand.u32 %v68, 4294901760
      %v136 = vsub.f32 %v68, %v135
      %v137 = vand.u32 %v136, 4294901760
      %v138 = vsub.f32 %v136, %v137
      %v139 = vand.u32 %v138, 4294901760
      %140 = vmatpush.msra.mxu0 %v139
      %v141 = vand.u32 %v67, 4294901760
      %v142 = vsub.f32 %v67, %v141
      %v143 = vand.u32 %v142, 4294901760
      %v144 = vsub.f32 %v142, %v143
      %v145 = vand.u32 %v144, 4294901760
      %146 = vmatpush.msra.mxu0 %v145
      %v147 = vand.u32 %v66, 4294901760
      %v148 = vsub.f32 %v66, %v147
      %v149 = vand.u32 %v148, 4294901760
      %v150 = vsub.f32 %v148, %v149
      %v151 = vand.u32 %v150, 4294901760
      %152 = vmatpush.msra.mxu0 %v151
      %v153 = vand.u32 %v65, 4294901760
      %v154 = vsub.f32 %v65, %v153
      %v155 = vand.u32 %v154, 4294901760
      %v156 = vsub.f32 %v154, %v155
      %v157 = vand.u32 %v156, 4294901760
      %158 = vmatpush.msra.mxu0 %v157
      %v159 = vand.u32 %v64, 4294901760
      %v160 = vsub.f32 %v64, %v159
      %v161 = vand.u32 %v160, 4294901760
      %v162 = vsub.f32 %v160, %v161
      %v163 = vand.u32 %v162, 4294901760
      %164 = vmatpush.msra.mxu0 %v163
      %v165 = vand.u32 %v63, 4294901760
      %v166 = vsub.f32 %v63, %v165
      %v167 = vand.u32 %v166, 4294901760
      %v168 = vsub.f32 %v166, %v167
      %v169 = vand.u32 %v168, 4294901760
      %170 = vmatpush.msra.mxu0 %v169
      %v171 = vand.u32 %v62, 4294901760
      %v172 = vsub.f32 %v62, %v171
      %v173 = vand.u32 %v172, 4294901760
      %v174 = vsub.f32 %v172, %v173
      %v175 = vand.u32 %v174, 4294901760
      %176 = vmatpush.msra.mxu0 %v175
      %v177 = vand.u32 %v61, 4294901760
      %v178 = vsub.f32 %v61, %v177
      %v179 = vand.u32 %v178, 4294901760
      %v180 = vsub.f32 %v178, %v179
      %v181 = vand.u32 %v180, 4294901760
      %182 = vmatpush.msra.mxu0 %v181
      %v183 = vand.u32 %v60, 4294901760
      %v184 = vsub.f32 %v60, %v183
      %v185 = vand.u32 %v184, 4294901760
      %v186 = vsub.f32 %v184, %v185
      %v187 = vand.u32 %v186, 4294901760
      %188 = vmatpush.msra.mxu0 %v187
      %v189 = vand.u32 %v59, 4294901760
      %v190 = vsub.f32 %v59, %v189
      %v191 = vand.u32 %v190, 4294901760
      %v192 = vsub.f32 %v190, %v191
      %v193 = vand.u32 %v192, 4294901760
      %194 = vmatpush.msra.mxu0 %v193
      %v195 = vand.u32 %v58, 4294901760
      %v196 = vsub.f32 %v58, %v195
      %v197 = vand.u32 %v196, 4294901760
      %v198 = vsub.f32 %v196, %v197
      %v199 = vand.u32 %v198, 4294901760
      %200 = vmatpush.msra.mxu0 %v199
      %v201 = vand.u32 %v57, 4294901760
      %v202 = vsub.f32 %v57, %v201
      %v203 = vand.u32 %v202, 4294901760
      %v204 = vsub.f32 %v202, %v203
      %v205 = vand.u32 %v204, 4294901760
      %206 = vmatpush.msra.mxu0 %v205
      %v207 = vand.u32 %v56, 4294901760
      %v208 = vsub.f32 %v56, %v207
      %v209 = vand.u32 %v208, 4294901760
      %v210 = vsub.f32 %v208, %v209
      %v211 = vand.u32 %v210, 4294901760
      %212 = vmatpush.msra.mxu0 %v211
      %v213 = vand.u32 %v55, 4294901760
      %214 = vmatmul.f32.gmra.mxu0 %v213
      %v215 = vpop.f32.mrf.mxu0
      %v216 = vadd.f32 %v115, %v215
      %217 = vdwg.mxu0
      %v218 = vand.u32 %v71, 4294901760
      %v219 = vsub.f32 %v71, %v218
      %220 = vmatpush.msra.mxu0 %v219
      %v221 = vand.u32 %v70, 4294901760
      %v222 = vsub.f32 %v70, %v221
      %223 = vmatpush.msra.mxu0 %v222
      %v224 = vand.u32 %v69, 4294901760
      %v225 = vsub.f32 %v69, %v224
      %226 = vmatpush.msra.mxu0 %v225
      %v227 = vand.u32 %v68, 4294901760
      %v228 = vsub.f32 %v68, %v227
      %229 = vmatpush.msra.mxu0 %v228
      %v230 = vand.u32 %v67, 4294901760
      %v231 = vsub.f32 %v67, %v230
      %232 = vmatpush.msra.mxu0 %v231
      %v233 = vand.u32 %v66, 4294901760
      %v234 = vsub.f32 %v66, %v233
      %235 = vmatpush.msra.mxu0 %v234
      %v236 = vand.u32 %v65, 4294901760
      %v237 = vsub.f32 %v65, %v236
      %238 = vmatpush.msra.mxu0 %v237
      %v239 = vand.u32 %v64, 4294901760
      %v240 = vsub.f32 %v64, %v239
      %241 = vmatpush.msra.mxu0 %v240
      %v242 = vand.u32 %v63, 4294901760
      %v243 = vsub.f32 %v63, %v242
      %244 = vmatpush.msra.mxu0 %v243
      %v245 = vand.u32 %v62, 4294901760
      %v246 = vsub.f32 %v62, %v245
      %247 = vmatpush.msra.mxu0 %v246
      %v248 = vand.u32 %v61, 4294901760
      %v249 = vsub.f32 %v61, %v248
      %250 = vmatpush.msra.mxu0 %v249
      %v251 = vand.u32 %v60, 4294901760
      %v252 = vsub.f32 %v60, %v251
      %253 = vmatpush.msra.mxu0 %v252
      %v254 = vand.u32 %v59, 4294901760
      %v255 = vsub.f32 %v59, %v254
      %256 = vmatpush.msra.mxu0 %v255
      %v257 = vand.u32 %v58, 4294901760
      %v258 = vsub.f32 %v58, %v257
      %259 = vmatpush.msra.mxu0 %v258
      %v260 = vand.u32 %v57, 4294901760
      %v261 = vsub.f32 %v57, %v260
      %262 = vmatpush.msra.mxu0 %v261
      %v263 = vand.u32 %v56, 4294901760
      %v264 = vsub.f32 %v56, %v263
      %265 = vmatpush.msra.mxu0 %v264
      %v266 = vand.u32 %v55, 4294901760
      %v267 = vsub.f32 %v55, %v266
      %268 = vmatmul.f32.gmra.mxu0 %v267
      %v269 = vpop.f32.mrf.mxu0
      %v270 = vadd.f32 %v216, %v269
      %271 = vdwg.mxu0
      %v272 = vand.u32 %v71, 4294901760
      %273 = vmatpush.msra.mxu0 %v272
      %v274 = vand.u32 %v70, 4294901760
      %275 = vmatpush.msra.mxu0 %v274
      %v276 = vand.u32 %v69, 4294901760
      %277 = vmatpush.msra.mxu0 %v276
      %v278 = vand.u32 %v68, 4294901760
      %279 = vmatpush.msra.mxu0 %v278
      %v280 = vand.u32 %v67, 4294901760
      %281 = vmatpush.msra.mxu0 %v280
      %v282 = vand.u32 %v66, 4294901760
      %283 = vmatpush.msra.mxu0 %v282
      %v284 = vand.u32 %v65, 4294901760
      %285 = vmatpush.msra.mxu0 %v284
      %v286 = vand.u32 %v64, 4294901760
      %287 = vmatpush.msra.mxu0 %v286
      %v288 = vand.u32 %v63, 4294901760
      %289 = vmatpush.msra.mxu0 %v288
      %v290 = vand.u32 %v62, 4294901760
      %291 = vmatpush.msra.mxu0 %v290
      %v292 = vand.u32 %v61, 4294901760
      %293 = vmatpush.msra.mxu0 %v292
      %v294 = vand.u32 %v60, 4294901760
      %295 = vmatpush.msra.mxu0 %v294
      %v296 = vand.u32 %v59, 4294901760
      %297 = vmatpush.msra.mxu0 %v296
      %v298 = vand.u32 %v58, 4294901760
      %299 = vmatpush.msra.mxu0 %v298
      %v300 = vand.u32 %v57, 4294901760
      %301 = vmatpush.msra.mxu0 %v300
      %v302 = vand.u32 %v56, 4294901760
      %303 = vmatpush.msra.mxu0 %v302
      %v304 = vand.u32 %v55, 4294901760
      %v305 = vsub.f32 %v55, %v304
      %v306 = vand.u32 %v305, 4294901760
      %307 = vmatmul.f32.gmra.mxu0 %v306
      %v308 = vpop.f32.mrf.mxu0
      %v309 = vadd.f32 %v270, %v308
      %310 = vdwg.mxu0
      %v311 = vand.u32 %v71, 4294901760
      %v312 = vsub.f32 %v71, %v311
      %v313 = vand.u32 %v312, 4294901760
      %314 = vmatpush.msra.mxu0 %v313
      %v315 = vand.u32 %v70, 4294901760
      %v316 = vsub.f32 %v70, %v315
      %v317 = vand.u32 %v316, 4294901760
      %318 = vmatpush.msra.mxu0 %v317
      %v319 = vand.u32 %v69, 4294901760
      %v320 = vsub.f32 %v69, %v319
      %v321 = vand.u32 %v320, 4294901760
      %322 = vmatpush.msra.mxu0 %v321
      %v323 = vand.u32 %v68, 4294901760
      %v324 = vsub.f32 %v68, %v323
      %v325 = vand.u32 %v324, 4294901760
      %326 = vmatpush.msra.mxu0 %v325
      %v327 = vand.u32 %v67, 4294901760
      %v328 = vsub.f32 %v67, %v327
      %v329 = vand.u32 %v328, 4294901760
      %330 = vmatpush.msra.mxu0 %v329
      %v331 = vand.u32 %v66, 4294901760
      %v332 = vsub.f32 %v66, %v331
      %v333 = vand.u32 %v332, 4294901760
      %334 = vmatpush.msra.mxu0 %v333
      %v335 = vand.u32 %v65, 4294901760
      %v336 = vsub.f32 %v65, %v335
      %v337 = vand.u32 %v336, 4294901760
      %338 = vmatpush.msra.mxu0 %v337
      %v339 = vand.u32 %v64, 4294901760
      %v340 = vsub.f32 %v64, %v339
      %v341 = vand.u32 %v340, 4294901760
      %342 = vmatpush.msra.mxu0 %v341
      %v343 = vand.u32 %v63, 4294901760
      %v344 = vsub.f32 %v63, %v343
      %v345 = vand.u32 %v344, 4294901760
      %346 = vmatpush.msra.mxu0 %v345
      %v347 = vand.u32 %v62, 4294901760
      %v348 = vsub.f32 %v62, %v347
      %v349 = vand.u32 %v348, 4294901760
      %350 = vmatpush.msra.mxu0 %v349
      %v351 = vand.u32 %v61, 4294901760
      %v352 = vsub.f32 %v61, %v351
      %v353 = vand.u32 %v352, 4294901760
      %354 = vmatpush.msra.mxu0 %v353
      %v355 = vand.u32 %v60, 4294901760
      %v356 = vsub.f32 %v60, %v355
      %v357 = vand.u32 %v356, 4294901760
      %358 = vmatpush.msra.mxu0 %v357
      %v359 = vand.u32 %v59, 4294901760
      %v360 = vsub.f32 %v59, %v359
      %v361 = vand.u32 %v360, 4294901760
      %362 = vmatpush.msra.mxu0 %v361
      %v363 = vand.u32 %v58, 4294901760
      %v364 = vsub.f32 %v58, %v363
      %v365 = vand.u32 %v364, 4294901760
      %366 = vmatpush.msra.mxu0 %v365
      %v367 = vand.u32 %v57, 4294901760
      %v368 = vsub.f32 %v57, %v367
      %v369 = vand.u32 %v368, 4294901760
      %370 = vmatpush.msra.mxu0 %v369
      %v371 = vand.u32 %v56, 4294901760
      %v372 = vsub.f32 %v56, %v371
      %v373 = vand.u32 %v372, 4294901760
      %374 = vmatpush.msra.mxu0 %v373
      %v375 = vand.u32 %v55, 4294901760
      %376 = vmatmul.f32.gmra.mxu0 %v375
      %v377 = vpop.f32.mrf.mxu0
      %v378 = vadd.f32 %v309, %v377
      %379 = vdwg.mxu0
      %v380 = vand.u32 %v71, 4294901760
      %381 = vmatpush.msra.mxu0 %v380
      %v382 = vand.u32 %v70, 4294901760
      %383 = vmatpush.msra.mxu0 %v382
      %v384 = vand.u32 %v69, 4294901760
      %385 = vmatpush.msra.mxu0 %v384
      %v386 = vand.u32 %v68, 4294901760
      %387 = vmatpush.msra.mxu0 %v386
      %v388 = vand.u32 %v67, 4294901760
      %389 = vmatpush.msra.mxu0 %v388
      %v390 = vand.u32 %v66, 4294901760
      %391 = vmatpush.msra.mxu0 %v390
      %v392 = vand.u32 %v65, 4294901760
      %393 = vmatpush.msra.mxu0 %v392
      %v394 = vand.u32 %v64, 4294901760
      %395 = vmatpush.msra.mxu0 %v394
      %v396 = vand.u32 %v63, 4294901760
      %397 = vmatpush.msra.mxu0 %v396
      %v398 = vand.u32 %v62, 4294901760
      %399 = vmatpush.msra.mxu0 %v398
      %v400 = vand.u32 %v61, 4294901760
      %401 = vmatpush.msra.mxu0 %v400
      %v402 = vand.u32 %v60, 4294901760
      %403 = vmatpush.msra.mxu0 %v402
      %v404 = vand.u32 %v59, 4294901760
      %405 = vmatpush.msra.mxu0 %v404
      %v406 = vand.u32 %v58, 4294901760
      %407 = vmatpush.msra.mxu0 %v406
      %v408 = vand.u32 %v57, 4294901760
      %409 = vmatpush.msra.mxu0 %v408
      %v410 = vand.u32 %v56, 4294901760
      %411 = vmatpush.msra.mxu0 %v410
      %v412 = vand.u32 %v55, 4294901760
      %413 = vmatmul.f32.gmra.mxu0 %v412
      %v414 = vpop.f32.mrf.mxu0
      %v415 = vadd.f32 %v378, %v414
      %416 = vdwg.mxu0
      %v417 = vmax.f32 %v415, 0.0
      %v418 = vld [vmem:[%s3] sm:$0xff]
      %v419 = vld [vmem:[%s3 + $0x8] sm:$0xff]
      %v420 = vld [vmem:[%s3 + $0x10] sm:$0xff]
      %v421 = vld [vmem:[%s3 + $0x18] sm:$0xff]
      %v422 = vld [vmem:[%s4] sm:$0x1]
      %v424 = vperm.slane %v422, 0
      %vm426 = vcmask 261120
      %v428 = vsel %vm426, %v417, 0
      %430 = vmatpush.msra.mxu0 0.0
      %431 = vmatpush.msra.mxu0 0.0
      %432 = vmatpush.msra.mxu0 0.0
      %433 = vmatpush.msra.mxu0 0.0
      %434 = vmatpush.msra.mxu0 0.0
      %435 = vmatpush.msra.mxu0 0.0
      %436 = vmatpush.msra.mxu0 0.0
      %437 = vmatpush.msra.mxu0 0.0
      %438 = vmatpush.msra.mxu0 0.0
      %439 = vmatpush.msra.mxu0 0.0
      %440 = vmatpush.msra.mxu0 0.0
      %441 = vmatpush.msra.mxu0 0.0
      %v442 = vand.u32 %v421, 4294901760
      %443 = vmatpush.msra.mxu0 %v442
      %v444 = vand.u32 %v420, 4294901760
      %445 = vmatpush.msra.mxu0 %v444
      %v446 = vand.u32 %v419, 4294901760
      %447 = vmatpush.msra.mxu0 %v446
      %v448 = vand.u32 %v418, 4294901760
      %449 = vmatpush.msra.mxu0 %v448
      %v450 = vand.u32 %v428, 4294901760
      %v451 = vsub.f32 %v428, %v450
      %v452 = vand.u32 %v451, 4294901760
      %v453 = vsub.f32 %v451, %v452
      %v454 = vand.u32 %v453, 4294901760
      %455 = vmatmul.f32.gmra.mxu0 %v454
      %v456 = vpop.f32.mrf.mxu0
      %v457 = vadd.f32 %v424, %v456
      %458 = vdwg.mxu0
      %459 = vmatpush.msra.mxu0 0.0
      %460 = vmatpush.msra.mxu0 0.0
      %461 = vmatpush.msra.mxu0 0.0
      %462 = vmatpush.msra.mxu0 0.0
      %463 = vmatpush.msra.mxu0 0.0
      %464 = vmatpush.msra.mxu0 0.0
      %465 = vmatpush.msra.mxu0 0.0
      %466 = vmatpush.msra.mxu0 0.0
      %467 = vmatpush.msra.mxu0 0.0
      %468 = vmatpush.msra.mxu0 0.0
      %469 = vmatpush.msra.mxu0 0.0
      %470 = vmatpush.msra.mxu0 0.0
      %v471 = vand.u32 %v421, 4294901760
      %v472 = vsub.f32 %v421, %v471
      %v473 = vand.u32 %v472, 4294901760
      %v474 = vsub.f32 %v472, %v473
      %v475 = vand.u32 %v474, 4294901760
      %476 = vmatpush.msra.mxu0 %v475
      %v477 = vand.u32 %v420, 4294901760
      %v478 = vsub.f32 %v420, %v477
      %v479 = vand.u32 %v478, 4294901760
      %v480 = vsub.f32 %v478, %v479
      %v481 = vand.u32 %v480, 4294901760
      %482 = vmatpush.msra.mxu0 %v481
      %v483 = vand.u32 %v419, 4294901760
      %v484 = vsub.f32 %v419, %v483
      %v485 = vand.u32 %v484, 4294901760
      %v486 = vsub.f32 %v484, %v485
      %v487 = vand.u32 %v486, 4294901760
      %488 = vmatpush.msra.mxu0 %v487
      %v489 = vand.u32 %v418, 4294901760
      %v490 = vsub.f32 %v418, %v489
      %v491 = vand.u32 %v490, 4294901760
      %v492 = vsub.f32 %v490, %v491
      %v493 = vand.u32 %v492, 4294901760
      %494 = vmatpush.msra.mxu0 %v493
      %v495 = vand.u32 %v428, 4294901760
      %496 = vmatmul.f32.gmra.mxu0 %v495
      %v497 = vpop.f32.mrf.mxu0
      %v498 = vadd.f32 %v457, %v497
      %499 = vdwg.mxu0
      %500 = vmatpush.msra.mxu0 0.0
      %501 = vmatpush.msra.mxu0 0.0
      %502 = vmatpush.msra.mxu0 0.0
      %503 = vmatpush.msra.mxu0 0.0
      %504 = vmatpush.msra.mxu0 0.0
      %505 = vmatpush.msra.mxu0 0.0
      %506 = vmatpush.msra.mxu0 0.0
      %507 = vmatpush.msra.mxu0 0.0
      %508 = vmatpush.msra.mxu0 0.0
      %509 = vmatpush.msra.mxu0 0.0
      %510 = vmatpush.msra.mxu0 0.0
      %511 = vmatpush.msra.mxu0 0.0
      %v512 = vand.u32 %v421, 4294901760
      %v513 = vsub.f32 %v421, %v512
      %514 = vmatpush.msra.mxu0 %v513
      %v515 = vand.u32 %v420, 4294901760
      %v516 = vsub.f32 %v420, %v515
      %517 = vmatpush.msra.mxu0 %v516
      %v518 = vand.u32 %v419, 4294901760
      %v519 = vsub.f32 %v419, %v518
      %520 = vmatpush.msra.mxu0 %v519
      %v521 = vand.u32 %v418, 4294901760
      %v522 = vsub.f32 %v418, %v521
      %523 = vmatpush.msra.mxu0 %v522
      %v524 = vand.u32 %v428, 4294901760
      %v525 = vsub.f32 %v428, %v524
      %526 = vmatmul.f32.gmra.mxu0 %v525
      %v527 = vpop.f32.mrf.mxu0
      %v528 = vadd.f32 %v498, %v527
      %529 = vdwg.mxu0
      %530 = vmatpush.msra.mxu0 0.0
      %531 = vmatpush.msra.mxu0 0.0
      %532 = vmatpush.msra.mxu0 0.0
      %533 = vmatpush.msra.mxu0 0.0
      %534 = vmatpush.msra.mxu0 0.0
      %535 = vmatpush.msra.mxu0 0.0
      %536 = vmatpush.msra.mxu0 0.0
      %537 = vmatpush.msra.mxu0 0.0
      %538 = vmatpush.msra.mxu0 0.0
      %539 = vmatpush.msra.mxu0 0.0
      %540 = vmatpush.msra.mxu0 0.0
      %541 = vmatpush.msra.mxu0 0.0
      %v542 = vand.u32 %v421, 4294901760
      %543 = vmatpush.msra.mxu0 %v542
      %v544 = vand.u32 %v420, 4294901760
      %545 = vmatpush.msra.mxu0 %v544
      %v546 = vand.u32 %v419, 4294901760
      %547 = vmatpush.msra.mxu0 %v546
      %v548 = vand.u32 %v418, 4294901760
      %549 = vmatpush.msra.mxu0 %v548
      %v550 = vand.u32 %v428, 4294901760
      %v551 = vsub.f32 %v428, %v550
      %v552 = vand.u32 %v551, 4294901760
      %553 = vmatmul.f32.gmra.mxu0 %v552
      %v554 = vpop.f32.mrf.mxu0
      %v555 = vadd.f32 %v528, %v554
      %556 = vdwg.mxu0
      %557 = vmatpush.msra.mxu0 0.0
      %558 = vmatpush.msra.mxu0 0.0
      %559 = vmatpush.msra.mxu0 0.0
      %560 = vmatpush.msra.mxu0 0.0
      %561 = vmatpush.msra.mxu0 0.0
      %562 = vmatpush.msra.mxu0 0.0
      %563 = vmatpush.msra.mxu0 0.0
      %564 = vmatpush.msra.mxu0 0.0
      %565 = vmatpush.msra.mxu0 0.0
      %566 = vmatpush.msra.mxu0 0.0
      %567 = vmatpush.msra.mxu0 0.0
      %568 = vmatpush.msra.mxu0 0.0
      %v569 = vand.u32 %v421, 4294901760
      %v570 = vsub.f32 %v421, %v569
      %v571 = vand.u32 %v570, 4294901760
      %572 = vmatpush.msra.mxu0 %v571
      %v573 = vand.u32 %v420, 4294901760
      %v574 = vsub.f32 %v420, %v573
      %v575 = vand.u32 %v574, 4294901760
      %576 = vmatpush.msra.mxu0 %v575
      %v577 = vand.u32 %v419, 4294901760
      %v578 = vsub.f32 %v419, %v577
      %v579 = vand.u32 %v578, 4294901760
      %580 = vmatpush.msra.mxu0 %v579
      %v581 = vand.u32 %v418, 4294901760
      %v582 = vsub.f32 %v418, %v581
      %v583 = vand.u32 %v582, 4294901760
      %584 = vmatpush.msra.mxu0 %v583
      %v585 = vand.u32 %v428, 4294901760
      %586 = vmatmul.f32.gmra.mxu0 %v585
      %v587 = vpop.f32.mrf.mxu0
      %v588 = vadd.f32 %v555, %v587
      %589 = vdwg.mxu0
      %590 = vmatpush.msra.mxu0 0.0
      %591 = vmatpush.msra.mxu0 0.0
      %592 = vmatpush.msra.mxu0 0.0
      %593 = vmatpush.msra.mxu0 0.0
      %594 = vmatpush.msra.mxu0 0.0
      %595 = vmatpush.msra.mxu0 0.0
      %596 = vmatpush.msra.mxu0 0.0
      %597 = vmatpush.msra.mxu0 0.0
      %598 = vmatpush.msra.mxu0 0.0
      %599 = vmatpush.msra.mxu0 0.0
      %600 = vmatpush.msra.mxu0 0.0
      %601 = vmatpush.msra.mxu0 0.0
      %v602 = vand.u32 %v421, 4294901760
      %603 = vmatpush.msra.mxu0 %v602
      %v604 = vand.u32 %v420, 4294901760
      %605 = vmatpush.msra.mxu0 %v604
      %v606 = vand.u32 %v419, 4294901760
      %607 = vmatpush.msra.mxu0 %v606
      %v608 = vand.u32 %v418, 4294901760
      %609 = vmatpush.msra.mxu0 %v608
      %v610 = vand.u32 %v428, 4294901760
      %611 = vmatmul.f32.gmra.mxu0 %v610
      %v612 = vpop.f32.mrf.mxu0
      %v613 = vadd.f32 %v588, %v612
      %614 = vdwg.mxu0
      %v615 = vxor.u32 %v613, 2147483648
      %v616 = vmul.f32 %v615, 1.442695
      %v617 = vpow.pop %v616
      %v618 = vadd.f32 %v617, 1.0
      %v619 = vrcp.pop %v618
      %v620 = vmul.f32 %v618, %v619
      %v621 = vsub.f32 1.0, %v620
      %v622 = vmul.f32 %v619, %v621
      %v623 = vadd.f32 %v619, %v622
      %vm624 = vweird.f32 %v618
      %vm625 = vweird.f32 %v619
      %vm626 = vmor %vm624, %vm625
      %v627 = vsel %vm626, %v619, %v623
      %v628 = vand.u32 2147483647, %v618
      %vm629 = vcmp.eq.f32.partialorder %v628, 8.507059e+37
      %v630 = vand.u32 %v618, 2147483648
      %v631 = vor.u32 1.1754944e-38, %v630
      %v632 = vsel %vm629, %v631, %v627
      %v633 = vmul.f32 1.0, %v632
      %v634 = vmul.f32 %v633, 0.9
      %v635 = vadd.f32 %v634, 0.1
      %v636 = vlaneseq
      %v637 = vand.u32 %v636, 127
      %vm638 = vcmp.lt.s32.totalorder %v637, 16
      %v639 = vsel %vm638, %v613, %v635
      %vm640 = vcmask 254976
      %641 = vst.msk [vmem:[#allocation3] sm:$0x3] %vm640, %v639
    $region29: #{tpu_custom_call.1} parent=1 // pred_fallthru
      _
    // Predicated region
    $region30: #{tpu_custom_call.1} parent=1 // pred_check
      _
    $region31: #{tpu_custom_call.1} parent=1 // pred_check_branch
      %643 = sbr.rel (0) target = $region33
    $region32: #{tpu_custom_call.1} parent=1 // pred_region
      %645 = vsyncadd [#allocation4], 0
      %s647 = sshll.u32 [#allocation3], 4
      %s648 = int_to_ptr.vmem [resolvable:$true] %s647
      %s649 = sshll.u32 %s5, 4
      %s650 = int_to_ptr.hbm [resolvable:$true] %s649
      %652 = dma.vmem_to_hbm [thread:$0]  %s648, 32, %s650, [#allocation4]
    $region33: #{tpu_custom_call.1} parent=1 // pred_fallthru
      _
    // Predicated region
    $region34: #{tpu_custom_call.1} parent=1 // pred_check
      _
    $region35: #{tpu_custom_call.1} parent=1 // pred_check_branch
      %654 = sbr.rel (0) target = $region37
    $region36: #{tpu_custom_call.1} parent=1 // pred_region
      %656 = dma.done [#allocation4], 32
    $region37: #{tpu_custom_call.1} parent=1 // pred_fallthru
      _
    %657 = vsyncpa [#allocation4], 1

</llo_original>
